<compile_context>
chip_gen: v7x
topology: tpu7x:2x2x1
jax: 0.10.0
libtpu: 0.0.40
codegen_flags: <defaults>
</compile_context>

<pallas_src>
import functools
import math

import jax
import jax.numpy as jnp
from jax import lax
from jax.experimental import pallas as pl
from jax.experimental.pallas import tpu as pltpu


def _conv_bn_relu_kernel(x_ref, w_ref, b_ref, o_ref, xcat_ref, *, H, W, KH, KW, P):
    """One batch element per grid step ('same' conv, stride 1).

    x_ref:    (Cin, H*W)         input, spatial flattened onto the lane axis
    w_ref:    (Cout, KH*KW*Cin)  BN-scale-folded weights, K axis ordered (kh, kw, cin)
    b_ref:    (Cout, 1)          folded BN bias (f32)
    o_ref:    (Cout, H*W)        output (Ho == H, Wo == W)
    xcat_ref: (KH*KW*Cin, H*W)   scratch: im2col patch matrix
    """
    Cin, M = x_ref.shape
    x = x_ref[...]

    need_mask = (KH > 1) or (KW > 1)
    if need_mask:
        # Flat lane index -> (row, col) of the spatial grid (static divisor).
        q = lax.broadcasted_iota(jnp.int32, (Cin, M), 1)
        w_splat = lax.full_like(q, W)
        row = lax.div(q, w_splat)
        col = q - row * w_splat

    # Build the im2col matrix: one (Cin, M) slab per tap.  The zero padding of
    # the conv is realised by a circular lane shift followed by masking of the
    # border rows/cols (wrapped lanes are always inside the masked region).
    for kh in range(KH):
        dh = kh - P
        for kw in range(KW):
            dw = kw - P
            s = dh * W + dw                      # flat shift for this tap
            tap = x if s == 0 else pltpu.roll(x, (-s) % M, axis=1)
            conds = []
            if dh < 0:
                conds.append(row >= -dh)
            elif dh > 0:
                conds.append(row < H - dh)
            if dw < 0:
                conds.append(col >= -dw)
            elif dw > 0:
                conds.append(col < W - dw)
            if conds:
                m = conds[0]
                for c in conds[1:]:
                    m = m & c
                tap = jnp.where(m, tap, jnp.zeros_like(tap))
            t = kh * KW + kw
            xcat_ref[t * Cin:(t + 1) * Cin, :] = tap

    # Single MXU matmul over the full receptive field (K = KH*KW*Cin), f32 acc.
    acc = jnp.dot(w_ref[...], xcat_ref[...], preferred_element_type=jnp.float32)

    # Fused BN bias + ReLU epilogue (f32), lane-dense store.
    y = jnp.maximum(acc + b_ref[...], 0.0)
    o_ref[...] = y.astype(o_ref.dtype)


def conv_bn_relu(x_nchw, w_oihw, gamma, beta, run_mean, run_var, *,
                 stride=1, padding=0, dilation=1, groups=1, eps=1e-3,
                 compute_dtype=jnp.float32):
    """Pallas implementation of Conv.forward (stride=1, dilation=1, groups=1,
    'same' padding 2p == k-1).  Takes/returns NCHW like the PyTorch module."""
    N, Cin, H, W = x_nchw.shape
    Cout, Cin_w, KH, KW = w_oihw.shape
    if stride != 1 or dilation != 1 or groups != 1 or Cin_w != Cin:
        raise NotImplementedError(
            "Pallas Conv kernel supports stride=1, dilation=1, groups=1 only")
    if KH != KW or 2 * padding != KH - 1:
        raise NotImplementedError(
            "Pallas Conv kernel supports 'same' convolutions (2*p == k-1) only")

    M = H * W
    Kc = KH * KW * Cin

    # Fold BN scale into the conv weights; keep the bias for the kernel epilogue.
    scale = gamma / jnp.sqrt(run_var + eps)                                  # (Cout,)
    bias = (beta - run_mean * scale).astype(jnp.float32).reshape(Cout, 1)    # (Cout, 1)
    w_flat = (jnp.transpose(w_oihw, (0, 2, 3, 1)) * scale[:, None, None, None]
              ).reshape(Cout, Kc).astype(compute_dtype)                      # (Cout, Kc)

    # Free layout prep: flatten spatial onto the lane axis (no transpose/pad).
    x_flat = x_nchw.reshape(N, Cin, M).astype(compute_dtype)

    kernel = functools.partial(_conv_bn_relu_kernel,
                               H=H, W=W, KH=KH, KW=KW, P=padding)

    out = pl.pallas_call(
        kernel,
        out_shape=jax.ShapeDtypeStruct((N, Cout, M), x_nchw.dtype),
        grid_spec=pltpu.PrefetchScalarGridSpec(
            num_scalar_prefetch=0,
            grid=(N,),
            in_specs=[
                pl.BlockSpec((None, Cin, M), lambda n: (n, 0, 0)),
                pl.BlockSpec((Cout, Kc), lambda n: (0, 0)),
                pl.BlockSpec((Cout, 1), lambda n: (0, 0)),
            ],
            out_specs=pl.BlockSpec((None, Cout, M), lambda n: (n, 0, 0)),
            scratch_shapes=[pltpu.VMEM((Kc, M), compute_dtype)],
        ),
        compiler_params=pltpu.CompilerParams(
            dimension_semantics=("parallel",)),
    )(x_flat, w_flat, bias)

    return out.reshape(N, Cout, H, W)   # free reshape, already NCHW-ordered


def _reference(x_nchw, w_oihw, gamma, beta, run_mean, run_var,
               *, padding=0, eps=1e-3):
    """Pure-JAX reference (lax conv + BN eval + ReLU), NCHW."""
    y = lax.conv_general_dilated(
        x_nchw, w_oihw, window_strides=(1, 1),
        padding=[(padding, padding), (padding, padding)],
        dimension_numbers=("NCHW", "OIHW", "NCHW"))
    s = (gamma / jnp.sqrt(run_var + eps))[None, :, None, None]
    b = (beta - run_mean * gamma / jnp.sqrt(run_var + eps))[None, :, None, None]
    return jnp.maximum(y * s + b, 0.0)


if __name__ == "__main__":
    # Module config: Conv(in_ch=4, out_ch=8, activation=ReLU, k=3, s=1, p=1)
    N, Cin, H, W = 2, 4, 16, 16
    Cout, K, P = 8, 3, 1
    eps = 0.001

    key = jax.random.PRNGKey(0)
    k_x, k_w, k_g, k_b, k_m, k_v = jax.random.split(key, 6)

    x = jax.random.normal(k_x, (N, Cin, H, W), jnp.float32)

    # Deterministic parameter init (shapes per torch.nn.Conv2d / BatchNorm2d).
    fan_in = Cin * K * K
    w = jax.random.normal(k_w, (Cout, Cin, K, K), jnp.float32) * math.sqrt(2.0 / fan_in)
    gamma = jax.random.uniform(k_g, (Cout,), jnp.float32, 0.5, 1.5)
    beta = 0.1 * jax.random.normal(k_b, (Cout,), jnp.float32)
    run_mean = 0.1 * jax.random.normal(k_m, (Cout,), jnp.float32)
    run_var = jax.random.uniform(k_v, (Cout,), jnp.float32, 0.5, 1.5)

    ref = _reference(x, w, gamma, beta, run_mean, run_var, padding=P, eps=eps)

    # Exact-semantics path (f32 matmul): must match the reference tightly.
    out = conv_bn_relu(x, w, gamma, beta, run_mean, run_var, padding=P, eps=eps)
    out = jax.block_until_ready(out)
    assert out.shape == (N, Cout, H, W), out.shape
    assert jnp.allclose(out, ref, atol=1e-4, rtol=1e-4), \
        float(jnp.max(jnp.abs(out - ref)))

    # Fast-MXU path for v6e/v7x: bf16 operands, f32 accumulation + f32 epilogue.
    out_bf16 = conv_bn_relu(x, w, gamma, beta, run_mean, run_var, padding=P,
                            eps=eps, compute_dtype=jnp.bfloat16)
    out_bf16 = jax.block_until_ready(out_bf16)
    assert jnp.allclose(out_bf16, ref, atol=7e-2, rtol=7e-2), \
        float(jnp.max(jnp.abs(out_bf16 - ref)))

    print("KERNEL_OK")
</pallas_src>

<mosaic_0001>
module attributes {stable_mosaic.version = 11 : i64} {
  func.func @_conv_bn_relu_kernel(%arg0: i32, %arg1: memref<1x4x256xf32, #tpu.memory_space<vmem>>, %arg2: memref<8x36xf32, #tpu.memory_space<vmem>>, %arg3: memref<8x1xf32, #tpu.memory_space<vmem>>, %arg4: memref<1x8x256xf32, #tpu.memory_space<vmem>>, %arg5: memref<36x256xf32, #tpu.memory_space<vmem>>) attributes {dimension_semantics = [#tpu.dimension_semantics<parallel>], iteration_bounds = array<i64: 2>, scalar_prefetch = 0 : i64, scratch_operands = 1 : i64, tpu.core_type = #tpu.core_type<tc>, window_params = [{transform_indices = @transform_0, window_bounds = array<i64: 1, 4, 256>}, {pipeline_mode = #tpu.pipeline_mode<synchronous>, transform_indices = @transform_1, window_bounds = array<i64: 8, 36>}, {pipeline_mode = #tpu.pipeline_mode<synchronous>, transform_indices = @transform_2, window_bounds = array<i64: 8, 1>}, {transform_indices = @transform_3, window_bounds = array<i64: 1, 8, 256>}]} {
    %c0 = arith.constant 0 : index
    %c0_0 = arith.constant 0 : index
    %c0_1 = arith.constant 0 : index
    %0 = vector.load %arg1[%c0, %c0_0, %c0_1] : memref<1x4x256xf32, #tpu.memory_space<vmem>>, vector<1x4x256xf32>
    %1 = vector.shape_cast %0 : vector<1x4x256xf32> to vector<4x256xf32>
    %2 = tpu.iota {dimensions = array<i32: 1>} : vector<4x256xi32>
    %c16_i32 = arith.constant 16 : i32
    %3 = vector.broadcast %c16_i32 : i32 to vector<4x256xi32>
    %4 = arith.divsi %2, %3 : vector<4x256xi32>
    %5 = arith.muli %4, %3 : vector<4x256xi32>
    %6 = arith.subi %2, %5 : vector<4x256xi32>
    %c17_i32 = arith.constant 17 : i32
    %7 = tpu.dynamic_rotate %1 by %c17_i32 dim 1 : vector<4x256xf32>, i32 -> vector<4x256xf32>
    %c1_i32 = arith.constant 1 : i32
    %8 = vector.broadcast %c1_i32 : i32 to vector<4x256xi32>
    %9 = arith.cmpi sge, %4, %8 : vector<4x256xi32>
    %c1_i32_2 = arith.constant 1 : i32
    %10 = vector.broadcast %c1_i32_2 : i32 to vector<4x256xi32>
    %11 = arith.cmpi sge, %6, %10 : vector<4x256xi32>
    %12 = arith.andi %9, %11 : vector<4x256xi1>
    %cst = arith.constant 0.000000e+00 : f32
    %13 = vector.broadcast %cst : f32 to vector<4x256xf32>
    %14 = arith.select %12, %7, %13 : vector<4x256xi1>, vector<4x256xf32>
    %c0_3 = arith.constant 0 : index
    %c0_4 = arith.constant 0 : index
    %15 = vector.load %arg5[%c0_3, %c0_4] : memref<36x256xf32, #tpu.memory_space<vmem>>, vector<4x256xf32>
    tpu.vector_store %arg5[%c0_3, %c0_4], %14 {strides = array<i32>} : memref<36x256xf32, #tpu.memory_space<vmem>>, vector<4x256xf32>,
    %c16_i32_5 = arith.constant 16 : i32
    %16 = tpu.dynamic_rotate %1 by %c16_i32_5 dim 1 : vector<4x256xf32>, i32 -> vector<4x256xf32>
    %c1_i32_6 = arith.constant 1 : i32
    %17 = vector.broadcast %c1_i32_6 : i32 to vector<4x256xi32>
    %18 = arith.cmpi sge, %4, %17 : vector<4x256xi32>
    %cst_7 = arith.constant 0.000000e+00 : f32
    %19 = vector.broadcast %cst_7 : f32 to vector<4x256xf32>
    %20 = arith.select %18, %16, %19 : vector<4x256xi1>, vector<4x256xf32>
    %c4 = arith.constant 4 : index
    %c0_8 = arith.constant 0 : index
    %21 = vector.load %arg5[%c4, %c0_8] : memref<36x256xf32, #tpu.memory_space<vmem>>, vector<4x256xf32>
    tpu.vector_store %arg5[%c4, %c0_8], %20 {strides = array<i32>} : memref<36x256xf32, #tpu.memory_space<vmem>>, vector<4x256xf32>,
    %c15_i32 = arith.constant 15 : i32
    %22 = tpu.dynamic_rotate %1 by %c15_i32 dim 1 : vector<4x256xf32>, i32 -> vector<4x256xf32>
    %c1_i32_9 = arith.constant 1 : i32
    %23 = vector.broadcast %c1_i32_9 : i32 to vector<4x256xi32>
    %24 = arith.cmpi sge, %4, %23 : vector<4x256xi32>
    %c15_i32_10 = arith.constant 15 : i32
    %25 = vector.broadcast %c15_i32_10 : i32 to vector<4x256xi32>
    %26 = arith.cmpi slt, %6, %25 : vector<4x256xi32>
    %27 = arith.andi %24, %26 : vector<4x256xi1>
    %cst_11 = arith.constant 0.000000e+00 : f32
    %28 = vector.broadcast %cst_11 : f32 to vector<4x256xf32>
    %29 = arith.select %27, %22, %28 : vector<4x256xi1>, vector<4x256xf32>
    %c8 = arith.constant 8 : index
    %c0_12 = arith.constant 0 : index
    %30 = vector.load %arg5[%c8, %c0_12] : memref<36x256xf32, #tpu.memory_space<vmem>>, vector<4x256xf32>
    tpu.vector_store %arg5[%c8, %c0_12], %29 {strides = array<i32>} : memref<36x256xf32, #tpu.memory_space<vmem>>, vector<4x256xf32>,
    %c1_i32_13 = arith.constant 1 : i32
    %31 = tpu.dynamic_rotate %1 by %c1_i32_13 dim 1 : vector<4x256xf32>, i32 -> vector<4x256xf32>
    %c1_i32_14 = arith.constant 1 : i32
    %32 = vector.broadcast %c1_i32_14 : i32 to vector<4x256xi32>
    %33 = arith.cmpi sge, %6, %32 : vector<4x256xi32>
    %cst_15 = arith.constant 0.000000e+00 : f32
    %34 = vector.broadcast %cst_15 : f32 to vector<4x256xf32>
    %35 = arith.select %33, %31, %34 : vector<4x256xi1>, vector<4x256xf32>
    %c12 = arith.constant 12 : index
    %c0_16 = arith.constant 0 : index
    %36 = vector.load %arg5[%c12, %c0_16] : memref<36x256xf32, #tpu.memory_space<vmem>>, vector<4x256xf32>
    tpu.vector_store %arg5[%c12, %c0_16], %35 {strides = array<i32>} : memref<36x256xf32, #tpu.memory_space<vmem>>, vector<4x256xf32>,
    %c16 = arith.constant 16 : index
    %c0_17 = arith.constant 0 : index
    %37 = vector.load %arg5[%c16, %c0_17] : memref<36x256xf32, #tpu.memory_space<vmem>>, vector<4x256xf32>
    tpu.vector_store %arg5[%c16, %c0_17], %1 {strides = array<i32>} : memref<36x256xf32, #tpu.memory_space<vmem>>, vector<4x256xf32>,
    %c255_i32 = arith.constant 255 : i32
    %38 = tpu.dynamic_rotate %1 by %c255_i32 dim 1 : vector<4x256xf32>, i32 -> vector<4x256xf32>
    %c15_i32_18 = arith.constant 15 : i32
    %39 = vector.broadcast %c15_i32_18 : i32 to vector<4x256xi32>
    %40 = arith.cmpi slt, %6, %39 : vector<4x256xi32>
    %cst_19 = arith.constant 0.000000e+00 : f32
    %41 = vector.broadcast %cst_19 : f32 to vector<4x256xf32>
    %42 = arith.select %40, %38, %41 : vector<4x256xi1>, vector<4x256xf32>
    %c20 = arith.constant 20 : index
    %c0_20 = arith.constant 0 : index
    %43 = vector.load %arg5[%c20, %c0_20] : memref<36x256xf32, #tpu.memory_space<vmem>>, vector<4x256xf32>
    tpu.vector_store %arg5[%c20, %c0_20], %42 {strides = array<i32>} : memref<36x256xf32, #tpu.memory_space<vmem>>, vector<4x256xf32>,
    %c241_i32 = arith.constant 241 : i32
    %44 = tpu.dynamic_rotate %1 by %c241_i32 dim 1 : vector<4x256xf32>, i32 -> vector<4x256xf32>
    %c15_i32_21 = arith.constant 15 : i32
    %45 = vector.broadcast %c15_i32_21 : i32 to vector<4x256xi32>
    %46 = arith.cmpi slt, %4, %45 : vector<4x256xi32>
    %c1_i32_22 = arith.constant 1 : i32
    %47 = vector.broadcast %c1_i32_22 : i32 to vector<4x256xi32>
    %48 = arith.cmpi sge, %6, %47 : vector<4x256xi32>
    %49 = arith.andi %46, %48 : vector<4x256xi1>
    %cst_23 = arith.constant 0.000000e+00 : f32
    %50 = vector.broadcast %cst_23 : f32 to vector<4x256xf32>
    %51 = arith.select %49, %44, %50 : vector<4x256xi1>, vector<4x256xf32>
    %c24 = arith.constant 24 : index
    %c0_24 = arith.constant 0 : index
    %52 = vector.load %arg5[%c24, %c0_24] : memref<36x256xf32, #tpu.memory_space<vmem>>, vector<4x256xf32>
    tpu.vector_store %arg5[%c24, %c0_24], %51 {strides = array<i32>} : memref<36x256xf32, #tpu.memory_space<vmem>>, vector<4x256xf32>,
    %c240_i32 = arith.constant 240 : i32
    %53 = tpu.dynamic_rotate %1 by %c240_i32 dim 1 : vector<4x256xf32>, i32 -> vector<4x256xf32>
    %c15_i32_25 = arith.constant 15 : i32
    %54 = vector.broadcast %c15_i32_25 : i32 to vector<4x256xi32>
    %55 = arith.cmpi slt, %4, %54 : vector<4x256xi32>
    %cst_26 = arith.constant 0.000000e+00 : f32
    %56 = vector.broadcast %cst_26 : f32 to vector<4x256xf32>
    %57 = arith.select %55, %53, %56 : vector<4x256xi1>, vector<4x256xf32>
    %c28 = arith.constant 28 : index
    %c0_27 = arith.constant 0 : index
    %58 = vector.load %arg5[%c28, %c0_27] : memref<36x256xf32, #tpu.memory_space<vmem>>, vector<4x256xf32>
    tpu.vector_store %arg5[%c28, %c0_27], %57 {strides = array<i32>} : memref<36x256xf32, #tpu.memory_space<vmem>>, vector<4x256xf32>,
    %c239_i32 = arith.constant 239 : i32
    %59 = tpu.dynamic_rotate %1 by %c239_i32 dim 1 : vector<4x256xf32>, i32 -> vector<4x256xf32>
    %c15_i32_28 = arith.constant 15 : i32
    %60 = vector.broadcast %c15_i32_28 : i32 to vector<4x256xi32>
    %61 = arith.cmpi slt, %4, %60 : vector<4x256xi32>
    %c15_i32_29 = arith.constant 15 : i32
    %62 = vector.broadcast %c15_i32_29 : i32 to vector<4x256xi32>
    %63 = arith.cmpi slt, %6, %62 : vector<4x256xi32>
    %64 = arith.andi %61, %63 : vector<4x256xi1>
    %cst_30 = arith.constant 0.000000e+00 : f32
    %65 = vector.broadcast %cst_30 : f32 to vector<4x256xf32>
    %66 = arith.select %64, %59, %65 : vector<4x256xi1>, vector<4x256xf32>
    %c32 = arith.constant 32 : index
    %c0_31 = arith.constant 0 : index
    %67 = vector.load %arg5[%c32, %c0_31] : memref<36x256xf32, #tpu.memory_space<vmem>>, vector<4x256xf32>
    tpu.vector_store %arg5[%c32, %c0_31], %66 {strides = array<i32>} : memref<36x256xf32, #tpu.memory_space<vmem>>, vector<4x256xf32>,
    %c0_32 = arith.constant 0 : index
    %c0_33 = arith.constant 0 : index
    %68 = vector.load %arg2[%c0_32, %c0_33] : memref<8x36xf32, #tpu.memory_space<vmem>>, vector<8x36xf32>
    %c0_34 = arith.constant 0 : index
    %c0_35 = arith.constant 0 : index
    %69 = vector.load %arg5[%c0_34, %c0_35] : memref<36x256xf32, #tpu.memory_space<vmem>>, vector<36x256xf32>
    %cst_36 = arith.constant dense<0.000000e+00> : vector<8x256xf32>
    %70 = tpu.matmul %68, %69, %cst_36 {dimension_numbers = #tpu.dot_dimension_numbers<[1], [0], [0], [1], [0, 0, 1, 1], [], []>} : vector<8x36xf32>, vector<36x256xf32>, vector<8x256xf32> -> vector<8x256xf32>
    %c0_37 = arith.constant 0 : index
    %c0_38 = arith.constant 0 : index
    %71 = vector.load %arg3[%c0_37, %c0_38] : memref<8x1xf32, #tpu.memory_space<vmem>>, vector<8x1xf32>
    %72 = vector.broadcast %71 : vector<8x1xf32> to vector<8x256xf32>
    %73 = arith.addf %70, %72 : vector<8x256xf32>
    %cst_39 = arith.constant 0.000000e+00 : f32
    %74 = vector.broadcast %cst_39 : f32 to vector<8x256xf32>
    %75 = arith.maximumf %73, %74 : vector<8x256xf32>
    %c0_40 = arith.constant 0 : index
    %c0_41 = arith.constant 0 : index
    %c0_42 = arith.constant 0 : index
    %76 = vector.load %arg4[%c0_40, %c0_41, %c0_42] : memref<1x8x256xf32, #tpu.memory_space<vmem>>, vector<1x8x256xf32>
    %77 = vector.shape_cast %76 : vector<1x8x256xf32> to vector<8x256xf32>
    %78 = vector.shape_cast %75 : vector<8x256xf32> to vector<1x8x256xf32>
    tpu.vector_store %arg4[%c0_40, %c0_41, %c0_42], %78 {strides = array<i32>} : memref<1x8x256xf32, #tpu.memory_space<vmem>>, vector<1x8x256xf32>,
    return
  }
  func.func @transform_0(%arg0: i32) -> (i32, i32, i32) {
    %c0_i32 = arith.constant 0 : i32
    %c0_i32_0 = arith.constant 0 : i32
    %c0_i32_1 = arith.constant 0 : i32
    return %arg0, %c0_i32, %c0_i32_0 : i32, i32, i32
  }
  func.func @transform_1(%arg0: i32) -> (i32, i32) {
    %c0_i32 = arith.constant 0 : i32
    %c0_i32_0 = arith.constant 0 : i32
    %c0_i32_1 = arith.constant 0 : i32
    return %c0_i32, %c0_i32_0 : i32, i32
  }
  func.func @transform_2(%arg0: i32) -> (i32, i32) {
    %c0_i32 = arith.constant 0 : i32
    %c0_i32_0 = arith.constant 0 : i32
    %c0_i32_1 = arith.constant 0 : i32
    return %c0_i32, %c0_i32_0 : i32, i32
  }
  func.func @transform_3(%arg0: i32) -> (i32, i32, i32) {
    %c0_i32 = arith.constant 0 : i32
    %c0_i32_0 = arith.constant 0 : i32
    %c0_i32_1 = arith.constant 0 : i32
    return %arg0, %c0_i32, %c0_i32_0 : i32, i32, i32
  }
}

</mosaic_0001>

<llo_original>
// kernel: tpu_custom_call.1
$region0: #{tpu_custom_call.1}
  #allocation0 [shape = 'u32[]', space=smem, size = 0x4, offset = 0x4, fixed_abs, tag = 'smem constant byte address 0x4 - core index']
  #allocation1 [shape = 'u32[144,128]{1,0:T(1,128)}', space=vmem, size = 0x12000, scoped, tag = 'internal scratch']
  #allocation2 [shape = 'f32[36,256]{1,0:T(8,128)}', space=vmem, size = 0xa000, scoped, tag = 'scratch operand']
  %s0 = inlined_call_operand.hbm [shape: f32[2,4,256], index: 0, kind: input, shape index: {}]
  %s1 = inlined_call_operand.vmem [shape: f32[8,36], index: 1, kind: input, shape index: {}]
  %s2 = inlined_call_operand.vmem [shape: f32[8,1], index: 2, kind: input, shape index: {}]
  %s3 = inlined_call_operand.hbm [shape: f32[2,8,256], index: 3, kind: output, shape index: {}]
  %s4 = sld [smem:[#allocation0]]
  $region49: #{tpu_custom_call.1} parent=0
    _
  %s6 = ssub.s32 1, %s4
  %s7 = scalar_select 0, %s6, %s4
  $region1: #{tpu_custom_call.1} parent=0
    #allocation3 [shape = 'u8[8192]{0}', space=vmem, size = 0x2000, scoped, tag = 'input window, operand 0']
    #allocation4 [shape = 's32[2]{0}', space=sflag, size = 0x8, scoped, tag = 'scoped memory for tpu_custom_call.1']
    #allocation5 [shape = 's32[2]{0}', space=sflag, size = 0x8, scoped, tag = 'scoped memory for tpu_custom_call.1']
    #allocation6 [shape = 'u8[16384]{0}', space=vmem, size = 0x4000, scoped, tag = 'output window, operand 0']
    %8 = vsyncpa [#allocation4], 0
    %s9 = scalar_lea.sflag [#allocation4], 1
    %10 = vsyncpa %s9, 0
    %11 = vsyncpa [#allocation5], 0
    %s12 = scalar_lea.sflag [#allocation5], 1
    %13 = vsyncpa %s12, 0
    loop: start=0, step=1, limit=4
    $region2: #{tpu_custom_call.1} parent=1 // loop_pre_header
      _
    $region3: #{tpu_custom_call.1} parent=1 // loop_header
      %s15 = sphi 0, %s19
      %p16 = scmp.ge.s32.totalorder %s15, 4
      %s25 = sphi 0, %s27
      %s28 = sphi 0, %s25
      %s29 = sphi 0, %s28
      %s45 = sphi 0, %s29
      %s49 = sphi 0, %s49
      %s51 = sphi 0, %s49
      %s52 = sphi 0, %s51
      %s66 = sphi 0, %s52
      %s70 = sphi 0, %s70
      %s72 = sphi 0, %s70
      %s73 = sphi 0, %s72
      %s87 = sphi 0, %s73
      %s93 = sphi 0, %s95
      %s96 = sphi 0, %s93
      %s97 = sphi 0, %s96
      %s113 = sphi 0, %s97
    $region4: #{tpu_custom_call.1} parent=1 // loop_header_branch
      %18 = sbr.rel (%p16) target = $region8
    $region5: #{tpu_custom_call.1} parent=1 // loop_body
      %s20 = ssub.s32 %s15, 1
      %s21 = ssub.s32 %s15, 2
      %s22 = sadd.s32 %s15, 1
      %s23 = ssub.s32 %s15, %s22
      %p24 = scmp.eq.s32.totalorder %s23, 0
      %s26 = sadd.s32 %s25, 1
      %s27 = scalar_select %p24, %s25, %s26
      %p30 = pneg %p24
      %p31 = scmp.eq.s32.totalorder %s15, 1
      %p32 = por %p30, %p31
      %p33 = scmp.ne.s32.totalorder %s25, %s28
      %p34 = scmp.eq.s32.totalorder %s15, 0
      %p35 = por %p33, %p34
      %p36 = scmp.ne.s32.totalorder %s25, %s28
      %p37 = scmp.eq.s32.totalorder %s20, 1
      %p38 = por %p36, %p37
      %p39 = scmp.ne.s32.totalorder %s28, %s29
      %p40 = scmp.eq.s32.totalorder %s20, 0
      %p41 = por %p39, %p40
      %p42 = scmp.ne.s32.totalorder %s28, %s29
      %p43 = scmp.eq.s32.totalorder %s21, 1
      %p44 = por %p42, %p43
      %p46 = scmp.ne.s32.totalorder %s29, %s45
      %p47 = scmp.eq.s32.totalorder %s21, 0
      %p48 = por %p46, %p47
      %s50 = sadd.s32 %s49, 1
      %p53 = scmp.eq.s32.totalorder %s15, 1
      %p54 = scmp.ne.s32.totalorder %s49, %s51
      %p55 = scmp.eq.s32.totalorder %s15, 0
      %p56 = por %p54, %p55
      %p57 = scmp.ne.s32.totalorder %s49, %s51
      %p58 = scmp.eq.s32.totalorder %s20, 1
      %p59 = por %p57, %p58
      %p60 = scmp.ne.s32.totalorder %s51, %s52
      %p61 = scmp.eq.s32.totalorder %s20, 0
      %p62 = por %p60, %p61
      %p63 = scmp.ne.s32.totalorder %s51, %s52
      %p64 = scmp.eq.s32.totalorder %s21, 1
      %p65 = por %p63, %p64
      %p67 = scmp.ne.s32.totalorder %s52, %s66
      %p68 = scmp.eq.s32.totalorder %s21, 0
      %p69 = por %p67, %p68
      %s71 = sadd.s32 %s70, 1
      %p74 = scmp.eq.s32.totalorder %s15, 1
      %p75 = scmp.ne.s32.totalorder %s70, %s72
      %p76 = scmp.eq.s32.totalorder %s15, 0
      %p77 = por %p75, %p76
      %p78 = scmp.ne.s32.totalorder %s70, %s72
      %p79 = scmp.eq.s32.totalorder %s20, 1
      %p80 = por %p78, %p79
      %p81 = scmp.ne.s32.totalorder %s72, %s73
      %p82 = scmp.eq.s32.totalorder %s20, 0
      %p83 = por %p81, %p82
      %p84 = scmp.ne.s32.totalorder %s72, %s73
      %p85 = scmp.eq.s32.totalorder %s21, 1
      %p86 = por %p84, %p85
      %p88 = scmp.ne.s32.totalorder %s73, %s87
      %p89 = scmp.eq.s32.totalorder %s21, 0
      %p90 = por %p88, %p89
      %s91 = ssub.s32 %s15, %s22
      %p92 = scmp.eq.s32.totalorder %s91, 0
      %s94 = sadd.s32 %s93, 1
      %s95 = scalar_select %p92, %s93, %s94
      %p98 = pneg %p92
      %p99 = scmp.eq.s32.totalorder %s15, 1
      %p100 = por %p98, %p99
      %p101 = scmp.ne.s32.totalorder %s93, %s96
      %p102 = scmp.eq.s32.totalorder %s15, 0
      %p103 = por %p101, %p102
      %p104 = scmp.ne.s32.totalorder %s93, %s96
      %p105 = scmp.eq.s32.totalorder %s20, 1
      %p106 = por %p104, %p105
      %p107 = scmp.ne.s32.totalorder %s96, %s97
      %p108 = scmp.eq.s32.totalorder %s20, 0
      %p109 = por %p107, %p108
      %p110 = scmp.ne.s32.totalorder %s96, %s97
      %p111 = scmp.eq.s32.totalorder %s21, 1
      %p112 = por %p110, %p111
      %p114 = scmp.ne.s32.totalorder %s97, %s113
      %p115 = scmp.eq.s32.totalorder %s21, 0
      %p116 = por %p114, %p115
      %p117 = scmp.le.s32.totalorder 1, %s15
      %p118 = scmp.lt.s32.totalorder %s15, 3
      %p119 = pnand %p117, %p118
      %p120 = pneg %p119
      // Predicated region
      $region9: #{tpu_custom_call.1} parent=5 // pred_check
        _
      $region10: #{tpu_custom_call.1} parent=5 // pred_check_branch
        %122 = sbr.rel (%p119) target = $region12
      $region11: #{tpu_custom_call.1} parent=5 // pred_region
        %s123 = ssub.s32 %s15, 1
        // Predicated region
        $region13: #{tpu_custom_call.1} parent=11 // pred_check
          %p124 = pneg %p62
        $region14: #{tpu_custom_call.1} parent=11 // pred_check_branch
          %126 = sbr.rel (%p124) target = $region16
        $region15: #{tpu_custom_call.1} parent=11 // pred_region
          _
        $region16: #{tpu_custom_call.1} parent=11 // pred_fallthru
          _
        // Predicated region
        $region17: #{tpu_custom_call.1} parent=11 // pred_check
          %p127 = pneg %p83
        $region18: #{tpu_custom_call.1} parent=11 // pred_check_branch
          %129 = sbr.rel (%p127) target = $region20
        $region19: #{tpu_custom_call.1} parent=11 // pred_region
          _
        $region20: #{tpu_custom_call.1} parent=11 // pred_fallthru
          _
      $region12: #{tpu_custom_call.1} parent=5 // pred_fallthru
        _
      %p130 = scmp.lt.s32.totalorder %s15, 2
      // Predicated region
      $region21: #{tpu_custom_call.1} parent=5 // pred_check
        %p131 = pneg %p130
      $region22: #{tpu_custom_call.1} parent=5 // pred_check_branch
        %133 = sbr.rel (%p131) target = $region24
      $region23: #{tpu_custom_call.1} parent=5 // pred_region
        // Predicated region
        $region25: #{tpu_custom_call.1} parent=23 // pred_check
          %p134 = pneg %p35
        $region26: #{tpu_custom_call.1} parent=23 // pred_check_branch
          %136 = sbr.rel (%p134) target = $region28
        $region27: #{tpu_custom_call.1} parent=23 // pred_region
          %s137 = sand.u32 %s25, 1
          %s138 = scalar_lea.sflag [#allocation4], %s137
          %s139 = sand.u32 %s25, 1
          %s140 = smul.addr %s139, 8
          %s141 = scalar_lea.vmem [#allocation3], %s140
          %s143 = ssub.s32 128, 128
          %144 = vsyncadd %s138, %s143
          %s145 = smul.addr %s15, 2
          %s146 = smul.addr %s145, 64
          %s147 = scalar_lea.hbm %s0, %s146
          %s149 = sshll.u32 %s141, 4
          %s150 = int_to_ptr.vmem [resolvable:$true] %s149
          %152 = dma.hbm_to_vmem [thread:$0]  %s147, 128, %s150, %s138
        $region28: #{tpu_custom_call.1} parent=23 // pred_fallthru
          _
      $region24: #{tpu_custom_call.1} parent=5 // pred_fallthru
        _
      %p153 = scmp.le.s32.totalorder 1, %s15
      %p154 = scmp.lt.s32.totalorder %s15, 3
      %p155 = pnand %p153, %p154
      %p156 = pneg %p155
      // Predicated region
      $region29: #{tpu_custom_call.1} parent=5 // pred_check
        _
      $region30: #{tpu_custom_call.1} parent=5 // pred_check_branch
        %158 = sbr.rel (%p155) target = $region32
      $region31: #{tpu_custom_call.1} parent=5 // pred_region
        %s159 = ssub.s32 %s15, 1
        %s160 = sand.u32 %s28, 1
        %s161 = scalar_lea.sflag [#allocation4], %s160
        %s162 = sand.u32 %s28, 1
        %s163 = smul.addr %s162, 8
        %s164 = scalar_lea.vmem [#allocation3], %s163
        // Predicated region
        $region33: #{tpu_custom_call.1} parent=31 // pred_check
          %p165 = pneg %p41
        $region34: #{tpu_custom_call.1} parent=31 // pred_check_branch
          %167 = sbr.rel (%p165) target = $region36
        $region35: #{tpu_custom_call.1} parent=31 // pred_region
          %168 = dma.done %s161, 128
        $region36: #{tpu_custom_call.1} parent=31 // pred_fallthru
          _
        %s169 = sand.u32 %s28, 1
        %s170 = scalar_lea.sflag [#allocation4], %s169
        %s171 = sand.u32 %s28, 1
        %s172 = smul.addr %s171, 8
        %s173 = scalar_lea.vmem [#allocation3], %s172
        %p174 = pneg %p41
        %p175 = pneg %p38
        %p176 = pneg %p62
        %p177 = pneg %p59
        %p178 = pneg %p83
        %p179 = pneg %p80
        %p180 = pneg %p109
        %p181 = pneg %p106
        %s182 = sand.u32 %s96, 1
        %s183 = scalar_lea.sflag [#allocation5], %s182
        %s184 = sand.u32 %s96, 1
        %s185 = smul.addr %s184, 16
        %s186 = scalar_lea.vmem [#allocation6], %s185
        %v187 = vld [vmem:[%s164] sm:$0xff]
        %v188 = vlaneseq
        %v189 = vand.u32 %v188, 127
        %v190 = vadd.s32 %v189, 128
        %vm191 = vcmp.lt.s32.totalorder %v189, 0
        %v192 = vsub.s32 0, %v189
        %v193 = vsel %vm191, %v192, %v189
        %v194 = vshrl.u32 %v193, 4
        %v195 = vand.u32 %v193, 15
        %v196 = vsub.s32 0, %v194
        %v197 = vsel %vm191, %v196, %v194
        %vm198 = vcmp.lt.s32.totalorder %v190, 0
        %v199 = vsub.s32 0, %v190
        %v200 = vsel %vm198, %v199, %v190
        %v201 = vshrl.u32 %v200, 4
        %v202 = vand.u32 %v200, 15
        %v203 = vsub.s32 0, %v201
        %v204 = vsel %vm198, %v203, %v201
        %v205 = vmul.u32 %v197, 16
        %v206 = vmul.u32 %v204, 16
        %v207 = vsub.s32 %v189, %v205
        %v208 = vsub.s32 %v190, %v206
        %v210 = vcombine.high %v187, %v187
        %212 = vrot.lane.b32.xlu0 %v187, 17
        %v213 = vpop.permute.xlu0 %212
        %214 = vrot.lane.b32.xlu0 %v210, 17
        %v215 = vpop.permute.xlu0 %214
        %vm216 = vcmp.lt.s32.totalorder %v189, 17
        %v217 = vsel %vm216, %v213, %v215
        %v218 = vsel %vm216, %v215, %v213
        %vm219 = vcmp.ge.s32.totalorder %v197, 1
        %vm220 = vcmp.ge.s32.totalorder %v204, 1
        %vm221 = vcmp.ge.s32.totalorder %v207, 1
        %vm222 = vcmp.ge.s32.totalorder %v208, 1
        %vm223 = vmand %vm219, %vm221
        %vm224 = vmand %vm220, %vm222
        %v225 = vsel %vm223, %v218, 0.0
        %v226 = vsel %vm224, %v217, 0.0
        %227 = vst [vmem:[#allocation2] sm:$0xf] %v225
        %228 = vst [vmem:[#allocation2 + $0x8] sm:$0xf] %v226
        %229 = vrot.lane.b32.xlu0 %v187, 16
        %v230 = vpop.permute.xlu0 %229
        %231 = vrot.lane.b32.xlu0 %v210, 16
        %v232 = vpop.permute.xlu0 %231
        %vm233 = vcmp.lt.s32.totalorder %v189, 16
        %v234 = vsel %vm233, %v230, %v232
        %v235 = vsel %vm233, %v232, %v230
        %v236 = vsel %vm219, %v235, 0.0
        %v237 = vsel %vm220, %v234, 0.0
        %v240 = vrot.slane %v236, 4
        %v241 = vrot.slane %v237, 4
        %244 = vst [vmem:[#allocation2] sm:$0xf0] %v240
        %245 = vst [vmem:[#allocation2 + $0x8] sm:$0xf0] %v241
        %246 = vrot.lane.b32.xlu0 %v187, 15
        %v247 = vpop.permute.xlu0 %246
        %248 = vrot.lane.b32.xlu0 %v210, 15
        %v249 = vpop.permute.xlu0 %248
        %vm250 = vcmp.lt.s32.totalorder %v189, 15
        %v251 = vsel %vm250, %v247, %v249
        %v252 = vsel %vm250, %v249, %v247
        %vm253 = vcmp.lt.s32.totalorder %v207, 15
        %vm254 = vcmp.lt.s32.totalorder %v208, 15
        %vm255 = vmand %vm219, %vm253
        %vm256 = vmand %vm220, %vm254
        %v257 = vsel %vm255, %v252, 0.0
        %v258 = vsel %vm256, %v251, 0.0
        %259 = vst [vmem:[#allocation2 + $0x10] sm:$0xf] %v257
        %260 = vst [vmem:[#allocation2 + $0x18] sm:$0xf] %v258
        %261 = vrot.lane.b32.xlu0 %v187, 1
        %v262 = vpop.permute.xlu0 %261
        %263 = vrot.lane.b32.xlu0 %v210, 1
        %v264 = vpop.permute.xlu0 %263
        %vm265 = vcmp.lt.s32.totalorder %v189, 1
        %v266 = vsel %vm265, %v262, %v264
        %v267 = vsel %vm265, %v264, %v262
        %v268 = vsel %vm221, %v267, 0.0
        %v269 = vsel %vm222, %v266, 0.0
        %v272 = vrot.slane %v268, 4
        %v273 = vrot.slane %v269, 4
        %276 = vst [vmem:[#allocation2 + $0x10] sm:$0xf0] %v272
        %277 = vst [vmem:[#allocation2 + $0x18] sm:$0xf0] %v273
        %278 = vst [vmem:[#allocation2 + $0x20] sm:$0xf] %v187
        %279 = vst [vmem:[#allocation2 + $0x28] sm:$0xf] %v210
        %280 = vrot.lane.b32.xlu0 %v187, 127
        %v281 = vpop.permute.xlu0 %280
        %282 = vrot.lane.b32.xlu0 %v210, 127
        %v283 = vpop.permute.xlu0 %282
        %vm284 = vcmp.lt.s32.totalorder %v189, 127
        %v285 = vsel %vm284, %v281, %v283
        %v286 = vsel %vm284, %v283, %v281
        %v287 = vsel %vm253, %v285, 0.0
        %v288 = vsel %vm254, %v286, 0.0
        %v291 = vrot.slane %v287, 4
        %v292 = vrot.slane %v288, 4
        %295 = vst [vmem:[#allocation2 + $0x20] sm:$0xf0] %v291
        %296 = vst [vmem:[#allocation2 + $0x28] sm:$0xf0] %v292
        %297 = vrot.lane.b32.xlu0 %v187, 113
        %v298 = vpop.permute.xlu0 %297
        %299 = vrot.lane.b32.xlu0 %v210, 113
        %v300 = vpop.permute.xlu0 %299
        %vm301 = vcmp.lt.s32.totalorder %v189, 113
        %v302 = vsel %vm301, %v298, %v300
        %v303 = vsel %vm301, %v300, %v298
        %vm304 = vcmp.lt.s32.totalorder %v197, 15
        %vm305 = vcmp.lt.s32.totalorder %v204, 15
        %vm306 = vmand %vm304, %vm221
        %vm307 = vmand %vm305, %vm222
        %v308 = vsel %vm306, %v302, 0.0
        %v309 = vsel %vm307, %v303, 0.0
        %310 = vst [vmem:[#allocation2 + $0x30] sm:$0xf] %v308
        %311 = vst [vmem:[#allocation2 + $0x38] sm:$0xf] %v309
        %312 = vrot.lane.b32.xlu0 %v187, 112
        %v313 = vpop.permute.xlu0 %312
        %314 = vrot.lane.b32.xlu0 %v210, 112
        %v315 = vpop.permute.xlu0 %314
        %vm316 = vcmp.lt.s32.totalorder %v189, 112
        %v317 = vsel %vm316, %v313, %v315
        %v318 = vsel %vm316, %v315, %v313
        %v319 = vsel %vm304, %v317, 0.0
        %v320 = vsel %vm305, %v318, 0.0
        %v323 = vrot.slane %v319, 4
        %v324 = vrot.slane %v320, 4
        %327 = vst [vmem:[#allocation2 + $0x30] sm:$0xf0] %v323
        %328 = vst [vmem:[#allocation2 + $0x38] sm:$0xf0] %v324
        %329 = vrot.lane.b32.xlu0 %v187, 111
        %v330 = vpop.permute.xlu0 %329
        %331 = vrot.lane.b32.xlu0 %v210, 111
        %v332 = vpop.permute.xlu0 %331
        %vm333 = vcmp.lt.s32.totalorder %v189, 111
        %v334 = vsel %vm333, %v330, %v332
        %v335 = vsel %vm333, %v332, %v330
        %vm336 = vmand %vm304, %vm253
        %vm337 = vmand %vm305, %vm254
        %v338 = vsel %vm336, %v334, 0.0
        %v339 = vsel %vm337, %v335, 0.0
        %340 = vst [vmem:[#allocation2 + $0x40] sm:$0xf] %v338
        %341 = vst [vmem:[#allocation2 + $0x48] sm:$0xf] %v339
        %v342 = vld [vmem:[%s1] sm:$0xff]
        %v343 = vld [vmem:[#allocation2] sm:$0xff]
        %v344 = vld [vmem:[#allocation2 + $0x8] sm:$0xff]
        %v345 = vld [vmem:[#allocation2 + $0x10] sm:$0xff]
        %v346 = vld [vmem:[#allocation2 + $0x18] sm:$0xff]
        %v347 = vld [vmem:[#allocation2 + $0x20] sm:$0xff]
        %v348 = vld [vmem:[#allocation2 + $0x28] sm:$0xff]
        %v349 = vld [vmem:[#allocation2 + $0x30] sm:$0xff]
        %v350 = vld [vmem:[#allocation2 + $0x38] sm:$0xff]
        %v351 = vld [vmem:[#allocation2 + $0x40] sm:$0xf]
        %v352 = vld [vmem:[#allocation2 + $0x48] sm:$0xf]
        %v353 = vld [vmem:[%s2] sm:$0xff]
        %355 = vset.pattern.permute.xlu0 0
        %356 = vperm.xlu0 %355, %v353
        %v357 = vpop.permute.xlu0 %356
        %vm359 = vcmask 293888
        %v361 = vsel %vm359, %v342, 0
        %vm363 = vcmask 1043456
        %v365 = vsel %vm363, %v351, 0
        %v368 = vsel %vm363, %v352, 0
        %370 = vmatprep.subr.mxu0 %v344
        %371 = vmatpush1.msra.mxu0 %v343
        %372 = vmatprep.subr.mxu0 %v346
        %373 = vmatpush1.msra.mxu0 %v345
        %374 = vmatprep.subr.mxu0 %v348
        %375 = vmatpush1.msra.mxu0 %v347
        %376 = vmatprep.subr.mxu0 %v350
        %377 = vmatpush1.msra.mxu0 %v349
        %378 = vmatprep.subr.mxu0 %v368
        %379 = vmatpush1.msra.mxu0 %v365
        %380 = vmatprep.subr.mxu0 0.0
        %381 = vmatpush1.msra.mxu0 0.0
        %382 = vmatprep.subr.mxu0 0.0
        %383 = vmatpush1.msra.mxu0 0.0
        %384 = vmatprep.subr.mxu0 0.0
        %385 = vmatpush1.msra.mxu0 0.0
        %386 = vmatprep.subr.mxu0 0.0
        %387 = vmatpush1.msra.mxu0 0.0
        %388 = vmatprep.subr.mxu0 0.0
        %389 = vmatpush1.msra.mxu0 0.0
        %390 = vmatprep.subr.mxu0 0.0
        %391 = vmatpush1.msra.mxu0 0.0
        %392 = vmatprep.subr.mxu0 0.0
        %393 = vmatpush1.msra.mxu0 0.0
        %394 = vmatprep.subr.mxu0 0.0
        %395 = vmatpush1.msra.mxu0 0.0
        %396 = vmatprep.subr.mxu0 0.0
        %397 = vmatpush1.msra.mxu0 0.0
        %398 = vmatprep.subr.mxu0 0.0
        %399 = vmatpush1.msra.mxu0 0.0
        %400 = vmatprep.subr.mxu0 0.0
        %401 = vmatpush1.msra.mxu0 0.0
        %402 = vmatprep.subr.mxu0 0.0
        %403 = vmatpush1.msra.mxu0 0.0
        %404 = vmatprep.subr.mxu0 0.0
        %405 = vmatpush1.msra.mxu0 0.0
        %406 = vmatprep.subr.mxu0 0.0
        %407 = vmatpush1.msra.mxu0 0.0
        %408 = vmatprep.subr.mxu0 0.0
        %409 = vmatpush1.msra.mxu0 0.0
        %410 = vmatprep.subr.mxu0 0.0
        %411 = vmatpush1.msra.mxu0 0.0
        %412 = vmatprep.subr.mxu0 0.0
        %413 = vmatpush1.msra.mxu0 0.0
        %414 = vmatprep.subr.mxu0 0.0
        %415 = vmatpush1.msra.mxu0 0.0
        %416 = vmatprep.subr.mxu0 0.0
        %417 = vmatpush1.msra.mxu0 0.0
        %418 = vmatprep.subr.mxu0 0.0
        %419 = vmatpush1.msra.mxu0 0.0
        %420 = vmatprep.subr.mxu0 0.0
        %421 = vmatpush1.msra.mxu0 0.0
        %422 = vmatprep.subr.mxu0 0.0
        %423 = vmatpush1.msra.mxu0 0.0
        %424 = vmatprep.subr.mxu0 0.0
        %425 = vmatpush1.msra.mxu0 0.0
        %426 = vmatprep.subr.mxu0 0.0
        %427 = vmatpush1.msra.mxu0 0.0
        %428 = vmatprep.subr.mxu0 0.0
        %429 = vmatpush1.msra.mxu0 0.0
        %430 = vmatprep.subr.mxu0 0.0
        %431 = vmatpush1.msra.mxu0 0.0
        %432 = vmatprep.subr.mxu0 0.0
        %433 = vmatpush1.msra.mxu0 0.0
        %434 = vmatprep.mubr.f32.mxu0 0.0
        %435 = vmatmul.mubr.f32.gmra.mrb[0].mxu0 %v361
        %v436 = vpop.f32.mrb[0].mxu0
        %v437 = vadd.f32 %v357, %v436
        %v438 = vpop.f32.mrb[0].mxu0
        %v439 = vadd.f32 %v357, %v438
        %440 = vdwg.mxu0
        %v441 = vmax.f32 %v437, 0.0
        %v442 = vmax.f32 %v439, 0.0
        %443 = vst [vmem:[%s186] sm:$0xff] %v441
        %444 = vst [vmem:[%s186 + $0x8] sm:$0xff] %v442
        %s445 = sand.u32 %s96, 1
        %s446 = scalar_lea.sflag [#allocation5], %s445
        %s447 = sand.u32 %s96, 1
        %s448 = smul.addr %s447, 16
        %s449 = scalar_lea.vmem [#allocation6], %s448
        // Predicated region
        $region37: #{tpu_custom_call.1} parent=31 // pred_check
          %p450 = pneg %p106
        $region38: #{tpu_custom_call.1} parent=31 // pred_check_branch
          %452 = sbr.rel (%p450) target = $region40
        $region39: #{tpu_custom_call.1} parent=31 // pred_region
          %s454 = ssub.s32 256, 256
          %455 = vsyncadd %s446, %s454
          %s456 = smul.addr %s20, 2
          %s457 = smul.addr %s456, 128
          %s458 = scalar_lea.hbm %s3, %s457
          %s460 = sshll.u32 %s449, 4
          %s461 = int_to_ptr.vmem [resolvable:$true] %s460
          %463 = dma.vmem_to_hbm [thread:$0]  %s461, 256, %s458, %s446
        $region40: #{tpu_custom_call.1} parent=31 // pred_fallthru
          _
      $region32: #{tpu_custom_call.1} parent=5 // pred_fallthru
        _
      %p464 = scmp.le.s32.totalorder 2, %s15
      // Predicated region
      $region41: #{tpu_custom_call.1} parent=5 // pred_check
        %p465 = pneg %p464
      $region42: #{tpu_custom_call.1} parent=5 // pred_check_branch
        %467 = sbr.rel (%p465) target = $region44
      $region43: #{tpu_custom_call.1} parent=5 // pred_region
        %s468 = ssub.s32 %s15, 2
        // Predicated region
        $region45: #{tpu_custom_call.1} parent=43 // pred_check
          %p469 = pneg %p112
        $region46: #{tpu_custom_call.1} parent=43 // pred_check_branch
          %471 = sbr.rel (%p469) target = $region48
        $region47: #{tpu_custom_call.1} parent=43 // pred_region
          %s472 = sand.u32 %s97, 1
          %s473 = scalar_lea.sflag [#allocation5], %s472
          %s474 = sand.u32 %s97, 1
          %s475 = smul.addr %s474, 16
          %s476 = scalar_lea.vmem [#allocation6], %s475
          %477 = dma.done %s473, 256
        $region48: #{tpu_custom_call.1} parent=43 // pred_fallthru
          _
      $region44: #{tpu_custom_call.1} parent=5 // pred_fallthru
        _
    $region6: #{tpu_custom_call.1} parent=1 // loop_footer
      %s19 = sadd.s32 1, %s15
    $region7: #{tpu_custom_call.1} parent=1 // loop_footer_branch
      %14 = sbr.rel target = $region3
    $region8: #{tpu_custom_call.1} parent=1 // loop_exit
      _
    %478 = vsyncpa [#allocation4], 1
    %s479 = scalar_lea.sflag [#allocation4], 1
    %480 = vsyncpa %s479, 1
    %481 = vsyncpa [#allocation5], 1
    %s482 = scalar_lea.sflag [#allocation5], 1
    %483 = vsyncpa %s482, 1

</llo_original>
